<compile_context>
chip_gen: v5e
topology: v5e:2x2
jax: 0.10.0
libtpu: 0.0.40
codegen_flags: <defaults>
</compile_context>

<pallas_src>
import functools

import jax
import jax.numpy as jnp
import numpy as np
from jax.experimental import pallas as pl
from jax.experimental.pallas import tpu as pltpu

HIDDEN = 256   # fc output width and MLP hidden width (fixed by the module)
LANE = 128


def _round_up(x, m):
    return ((x + m - 1) // m) * m


# --------------------------------------------------------------------------------------
# Kernel
# --------------------------------------------------------------------------------------
def _fused_attn_kernel(x_ref, w1_ref, b1_ref, w2_ref, b2_ref, w3_ref, b3_ref,
                       o_ref, *, seq_len):
    """(TB, S*A) @ folded-L1 -> tanh -> L2 -> tanh -> L3 -> tanh -> masked softmax."""
    cdt = w1_ref.dtype  # matmul compute dtype (bf16 by default); accumulate/bias/tanh in f32
    h1 = jnp.tanh(
        jnp.dot(x_ref[...], w1_ref[...], preferred_element_type=jnp.float32)
        + b1_ref[...])
    h2 = jnp.tanh(
        jnp.dot(h1.astype(cdt), w2_ref[...], preferred_element_type=jnp.float32)
        + b2_ref[...])
    s = jnp.tanh(
        jnp.dot(h2.astype(cdt), w3_ref[...], preferred_element_type=jnp.float32)
        + b3_ref[...])

    # s = tanh(.) in [-1, 1] => exp cannot overflow: skip the max-subtraction entirely.
    s_pad = o_ref.shape[-1]
    if seq_len != s_pad:
        # Mask the padded lanes (w3/b3 were zero-padded, so they'd contribute exp(0)=1).
        col = jax.lax.broadcasted_iota(jnp.int32, s.shape, 1)
        e = jnp.where(col < seq_len, jnp.exp(s), 0.0)
    else:
        e = jnp.exp(s)
    denom = jnp.sum(e, axis=-1, keepdims=True)
    o_ref[...] = e * pl.reciprocal(denom, approx=True)


# --------------------------------------------------------------------------------------
# One-time weight preparation (hoisted out of the per-call path; reuse across calls)
# --------------------------------------------------------------------------------------
def prepare_params(params, *, compute_dtype=jnp.bfloat16):
    """Fold fc into L1, lane-pad L3, cast matmul operands. Call once per weight set.

      W1_fold[s*A + a, :] = (W_fc @ W1[s*256:(s+1)*256, :])[a, :]
      b1_fold             = b1 + b_fc @ sum_s W1[s*256:(s+1)*256, :]
    so view(B,-1) @ W1 == x.reshape(B, S*A) @ W1_fold.  The fold costs ~S*A*256*256 FLOPs
    (>> the kernel at small batch), which is why it is amortized here.
    """
    w_fc = params["w_fc"].astype(jnp.float32)
    A = w_fc.shape[0]
    S = params["w3"].shape[1]

    w1_r = params["w1"].astype(jnp.float32).reshape(S, HIDDEN, HIDDEN)     # (S, 256, 256)
    w1_fold = jnp.einsum("ah,shk->sak", w_fc, w1_r).reshape(S * A, HIDDEN)  # (S*A, 256)
    b1_fold = (params["b1"].astype(jnp.float32)
               + params["b_fc"].astype(jnp.float32) @ w1_r.sum(axis=0))     # (1, 256)

    # Lane-dense score slab: pad L3 output width up to a multiple of 128 (unmasked vst).
    S_pad = _round_up(max(S, LANE), LANE)
    w3_p = jnp.zeros((HIDDEN, S_pad), jnp.float32).at[:, :S].set(params["w3"].astype(jnp.float32))
    b3_p = jnp.zeros((1, S_pad), jnp.float32).at[:, :S].set(params["b3"].astype(jnp.float32))

    return dict(
        w1=w1_fold.astype(compute_dtype), b1=b1_fold,
        w2=params["w2"].astype(compute_dtype), b2=params["b2"].astype(jnp.float32),
        w3=w3_p.astype(compute_dtype), b3=b3_p,
    )


# --------------------------------------------------------------------------------------
# Row-tile selection
# --------------------------------------------------------------------------------------
def _choose_row_tile(batch, in_cols, out_cols, in_itemsize):
    b8 = _round_up(max(batch, 1), 8)
    # Big tiles amortize the ~0.35 us per-step overhead, but keep >= 2 steps whenever the
    # batch allows so both v7x TensorCores get work under dimension_semantics=("parallel",).
    tb = max(8, min(2048, _round_up(pl.cdiv(b8, 2), 8)))
    # Conservative VMEM cap for row-scaled buffers: double-buffered x/out tiles plus the
    # f32 (TB, 256) h1/h2 temporaries.  Weights fit inside the 48 MiB scoped limit.
    per_row = 2 * in_cols * in_itemsize + 2 * out_cols * 4 + 2 * HIDDEN * 4
    tb_vmem = max(8, (24 * 1024 * 1024 // per_row) // 8 * 8)
    return min(tb, tb_vmem)


# --------------------------------------------------------------------------------------
# Forward wrapper
# --------------------------------------------------------------------------------------
@jax.jit
def temporal_attention_forward(x, prepped):
    """x: (B, S, A) float; prepped: output of prepare_params for matching (S, A)."""
    B, S, A = x.shape
    w1, b1 = prepped["w1"], prepped["b1"]
    w2, b2 = prepped["w2"], prepped["b2"]
    w3, b3 = prepped["w3"], prepped["b3"]
    S_pad = w3.shape[1]
    assert w1.shape[0] == S * A, "prepared params do not match (seq_len, attention_size)"

    xflat = x.reshape(B, S * A).astype(w1.dtype)
    TB = _choose_row_tile(B, S * A, S_pad, jnp.dtype(xflat.dtype).itemsize)
    # Ragged last tile is handled by Pallas (rows are independent): no jnp.pad of activations.
    grid = (pl.cdiv(B, TB),)

    kernel = functools.partial(_fused_attn_kernel, seq_len=S)

    out = pl.pallas_call(
        kernel,
        out_shape=jax.ShapeDtypeStruct((B, S_pad), jnp.float32),
        grid_spec=pltpu.PrefetchScalarGridSpec(
            num_scalar_prefetch=0,
            grid=grid,
            in_specs=[
                pl.BlockSpec((TB, S * A), lambda i: (i, 0)),        # activations (row-tiled)
                pl.BlockSpec((S * A, HIDDEN), lambda i: (0, 0)),    # folded L1 weights (resident)
                pl.BlockSpec((1, HIDDEN), lambda i: (0, 0)),        # folded L1 bias (f32)
                pl.BlockSpec((HIDDEN, HIDDEN), lambda i: (0, 0)),   # L2 weights
                pl.BlockSpec((1, HIDDEN), lambda i: (0, 0)),        # L2 bias (f32)
                pl.BlockSpec((HIDDEN, S_pad), lambda i: (0, 0)),    # L3 weights (lane-padded)
                pl.BlockSpec((1, S_pad), lambda i: (0, 0)),         # L3 bias (lane-padded, f32)
            ],
            out_specs=pl.BlockSpec((TB, S_pad), lambda i: (i, 0)),
        ),
        compiler_params=pltpu.CompilerParams(
            dimension_semantics=("parallel",),       # shards row tiles across TCs on v7x
            vmem_limit_bytes=48 * 1024 * 1024,       # headroom under v7x's 64 MiB physical VMEM
        ),
    )(xflat, w1, b1, w2, b2, w3, b3)

    return out[:, :S]


# --------------------------------------------------------------------------------------
# Synthetic init + pure-JAX reference (matches the PyTorch module exactly)
# --------------------------------------------------------------------------------------
def init_params(key, attention_size, seq_len):
    """Deterministic synthetic init mimicking PyTorch Linear default U[-1/sqrt(fan_in), ...]."""

    def linear(k, fan_in, fan_out):
        kw, kb = jax.random.split(k)
        bound = 1.0 / float(np.sqrt(fan_in))
        w = jax.random.uniform(kw, (fan_in, fan_out), jnp.float32, -bound, bound)
        b = jax.random.uniform(kb, (1, fan_out), jnp.float32, -bound, bound)
        return w, b

    k = jax.random.split(key, 4)
    w_fc, b_fc = linear(k[0], attention_size, HIDDEN)
    w1, b1 = linear(k[1], HIDDEN * seq_len, HIDDEN)
    w2, b2 = linear(k[2], HIDDEN, HIDDEN)
    w3, b3 = linear(k[3], HIDDEN, seq_len)
    return dict(w_fc=w_fc, b_fc=b_fc, w1=w1, b1=b1, w2=w2, b2=b2, w3=w3, b3=b3)


def reference_forward(x, params):
    """Pure-JAX reference matching the PyTorch module exactly (f32, no folding)."""
    B, S, A = x.shape
    xf = x.reshape(B * S, A) @ params["w_fc"] + params["b_fc"]
    xflat = xf.reshape(B, S * HIDDEN)
    h1 = jnp.tanh(xflat @ params["w1"] + params["b1"])
    h2 = jnp.tanh(h1 @ params["w2"] + params["b2"])
    s = jnp.tanh(h2 @ params["w3"] + params["b3"])
    return jax.nn.softmax(s, axis=-1)


if __name__ == "__main__":
    batch, seq_len, attention_size = 2, 8, 32

    key = jax.random.PRNGKey(0)
    kx, kp = jax.random.split(key)
    x = jax.random.normal(kx, (batch, seq_len, attention_size), dtype=jnp.float32)
    params = init_params(kp, attention_size, seq_len)
    ref = reference_forward(x, params)

    # 1) f32 compute path: tight check of the fused kernel / fc->L1 fold structure.
    #    (Tolerance slightly relaxed vs. 1e-5: fold changes FP summation order; softmax
    #     denominator uses the approximate EUP reciprocal.)
    prepped_f32 = jax.block_until_ready(prepare_params(params, compute_dtype=jnp.float32))
    out_f32 = jax.block_until_ready(temporal_attention_forward(x, prepped_f32))
    assert out_f32.shape == (batch, seq_len)
    np.testing.assert_allclose(np.asarray(out_f32), np.asarray(ref), rtol=2e-3, atol=2e-3)

    # 2) bf16 matmul path (performance default on v5e/v6e/v7x): looser tolerance, softmax
    #    saturation keeps the end-to-end error small.
    prepped_bf16 = jax.block_until_ready(prepare_params(params))
    out_bf16 = jax.block_until_ready(temporal_attention_forward(x, prepped_bf16))
    assert out_bf16.shape == (batch, seq_len)
    np.testing.assert_allclose(np.asarray(out_bf16), np.asarray(ref), rtol=2e-2, atol=2e-2)

    print("KERNEL_OK")
</pallas_src>

<mosaic_0001>
module attributes {stable_mosaic.version = 11 : i64} {
  func.func @_fused_attn_kernel(%arg0: i32, %arg1: memref<8x256xf32, #tpu.memory_space<vmem>>, %arg2: memref<256x256xf32, #tpu.memory_space<vmem>>, %arg3: memref<1x256xf32, #tpu.memory_space<vmem>>, %arg4: memref<256x256xf32, #tpu.memory_space<vmem>>, %arg5: memref<1x256xf32, #tpu.memory_space<vmem>>, %arg6: memref<256x128xf32, #tpu.memory_space<vmem>>, %arg7: memref<1x128xf32, #tpu.memory_space<vmem>>, %arg8: memref<8x128xf32, #tpu.memory_space<vmem>>) attributes {dimension_semantics = [#tpu.dimension_semantics<parallel>], iteration_bounds = array<i64: 1>, scalar_prefetch = 0 : i64, scratch_operands = 0 : i64, tpu.core_type = #tpu.core_type<tc>, window_params = [{transform_indices = @transform_0, window_bounds = array<i64: 8, 256>}, {pipeline_mode = #tpu.pipeline_mode<synchronous>, transform_indices = @transform_1, window_bounds = array<i64: 256, 256>}, {pipeline_mode = #tpu.pipeline_mode<synchronous>, transform_indices = @transform_2, window_bounds = array<i64: 1, 256>}, {pipeline_mode = #tpu.pipeline_mode<synchronous>, transform_indices = @transform_3, window_bounds = array<i64: 256, 256>}, {pipeline_mode = #tpu.pipeline_mode<synchronous>, transform_indices = @transform_4, window_bounds = array<i64: 1, 256>}, {pipeline_mode = #tpu.pipeline_mode<synchronous>, transform_indices = @transform_5, window_bounds = array<i64: 256, 128>}, {pipeline_mode = #tpu.pipeline_mode<synchronous>, transform_indices = @transform_6, window_bounds = array<i64: 1, 128>}, {transform_indices = @transform_7, window_bounds = array<i64: 8, 128>}]} {
    %c0 = arith.constant 0 : index
    %c0_0 = arith.constant 0 : index
    %0 = vector.load %arg1[%c0, %c0_0] : memref<8x256xf32, #tpu.memory_space<vmem>>, vector<8x256xf32>
    %c0_1 = arith.constant 0 : index
    %c0_2 = arith.constant 0 : index
    %1 = vector.load %arg2[%c0_1, %c0_2] : memref<256x256xf32, #tpu.memory_space<vmem>>, vector<256x256xf32>
    %cst = arith.constant dense<0.000000e+00> : vector<8x256xf32>
    %2 = tpu.matmul %0, %1, %cst {dimension_numbers = #tpu.dot_dimension_numbers<[1], [0], [0], [1], [0, 0, 1, 1], [], []>} : vector<8x256xf32>, vector<256x256xf32>, vector<8x256xf32> -> vector<8x256xf32>
    %c0_3 = arith.constant 0 : index
    %c0_4 = arith.constant 0 : index
    %3 = vector.load %arg3[%c0_3, %c0_4] : memref<1x256xf32, #tpu.memory_space<vmem>>, vector<1x256xf32>
    %4 = vector.broadcast %3 : vector<1x256xf32> to vector<8x256xf32>
    %5 = arith.addf %2, %4 : vector<8x256xf32>
    %6 = math.tanh %5 : vector<8x256xf32>
    %c0_5 = arith.constant 0 : index
    %c0_6 = arith.constant 0 : index
    %7 = vector.load %arg4[%c0_5, %c0_6] : memref<256x256xf32, #tpu.memory_space<vmem>>, vector<256x256xf32>
    %cst_7 = arith.constant dense<0.000000e+00> : vector<8x256xf32>
    %8 = tpu.matmul %6, %7, %cst_7 {dimension_numbers = #tpu.dot_dimension_numbers<[1], [0], [0], [1], [0, 0, 1, 1], [], []>} : vector<8x256xf32>, vector<256x256xf32>, vector<8x256xf32> -> vector<8x256xf32>
    %c0_8 = arith.constant 0 : index
    %c0_9 = arith.constant 0 : index
    %9 = vector.load %arg5[%c0_8, %c0_9] : memref<1x256xf32, #tpu.memory_space<vmem>>, vector<1x256xf32>
    %10 = vector.broadcast %9 : vector<1x256xf32> to vector<8x256xf32>
    %11 = arith.addf %8, %10 : vector<8x256xf32>
    %12 = math.tanh %11 : vector<8x256xf32>
    %c0_10 = arith.constant 0 : index
    %c0_11 = arith.constant 0 : index
    %13 = vector.load %arg6[%c0_10, %c0_11] : memref<256x128xf32, #tpu.memory_space<vmem>>, vector<256x128xf32>
    %cst_12 = arith.constant dense<0.000000e+00> : vector<8x128xf32>
    %14 = tpu.matmul %12, %13, %cst_12 {dimension_numbers = #tpu.dot_dimension_numbers<[1], [0], [0], [1], [0, 0, 1, 1], [], []>} : vector<8x256xf32>, vector<256x128xf32>, vector<8x128xf32> -> vector<8x128xf32>
    %c0_13 = arith.constant 0 : index
    %c0_14 = arith.constant 0 : index
    %15 = vector.load %arg7[%c0_13, %c0_14] : memref<1x128xf32, #tpu.memory_space<vmem>>, vector<1x128xf32>
    %16 = vector.broadcast %15 : vector<1x128xf32> to vector<8x128xf32>
    %17 = arith.addf %14, %16 : vector<8x128xf32>
    %18 = math.tanh %17 : vector<8x128xf32>
    %19 = tpu.iota {dimensions = array<i32: 1>} : vector<8x128xi32>
    %c8_i32 = arith.constant 8 : i32
    %20 = vector.broadcast %c8_i32 : i32 to vector<8x128xi32>
    %21 = arith.cmpi slt, %19, %20 : vector<8x128xi32>
    %22 = math.exp %18 : vector<8x128xf32>
    %cst_15 = arith.constant 0.000000e+00 : f32
    %23 = vector.broadcast %cst_15 : f32 to vector<8x128xf32>
    %24 = arith.select %21, %22, %23 : vector<8x128xi1>, vector<8x128xf32>
    %cst_16 = arith.constant dense<0.000000e+00> : vector<8xf32>
    %25 = vector.multi_reduction <add>, %24, %cst_16 [1] : vector<8x128xf32> to vector<8xf32>
    %26 = vector.shape_cast %25 : vector<8xf32> to vector<8x1xf32>
    %27 = tpu.reciprocal %26 {approx = true} : vector<8x1xf32> -> vector<8x1xf32>
    %28 = vector.broadcast %27 : vector<8x1xf32> to vector<8x128xf32>
    %29 = arith.mulf %24, %28 : vector<8x128xf32>
    %c0_17 = arith.constant 0 : index
    %c0_18 = arith.constant 0 : index
    %30 = vector.load %arg8[%c0_17, %c0_18] : memref<8x128xf32, #tpu.memory_space<vmem>>, vector<8x128xf32>
    tpu.vector_store %arg8[%c0_17, %c0_18], %29 {strides = array<i32>} : memref<8x128xf32, #tpu.memory_space<vmem>>, vector<8x128xf32>,
    return
  }
  func.func @transform_0(%arg0: i32) -> (i32, i32) {
    %c0_i32 = arith.constant 0 : i32
    %c0_i32_0 = arith.constant 0 : i32
    return %arg0, %c0_i32 : i32, i32
  }
  func.func @transform_1(%arg0: i32) -> (i32, i32) {
    %c0_i32 = arith.constant 0 : i32
    %c0_i32_0 = arith.constant 0 : i32
    %c0_i32_1 = arith.constant 0 : i32
    return %c0_i32, %c0_i32_0 : i32, i32
  }
  func.func @transform_2(%arg0: i32) -> (i32, i32) {
    %c0_i32 = arith.constant 0 : i32
    %c0_i32_0 = arith.constant 0 : i32
    %c0_i32_1 = arith.constant 0 : i32
    return %c0_i32, %c0_i32_0 : i32, i32
  }
  func.func @transform_3(%arg0: i32) -> (i32, i32) {
    %c0_i32 = arith.constant 0 : i32
    %c0_i32_0 = arith.constant 0 : i32
    %c0_i32_1 = arith.constant 0 : i32
    return %c0_i32, %c0_i32_0 : i32, i32
  }
  func.func @transform_4(%arg0: i32) -> (i32, i32) {
    %c0_i32 = arith.constant 0 : i32
    %c0_i32_0 = arith.constant 0 : i32
    %c0_i32_1 = arith.constant 0 : i32
    return %c0_i32, %c0_i32_0 : i32, i32
  }
  func.func @transform_5(%arg0: i32) -> (i32, i32) {
    %c0_i32 = arith.constant 0 : i32
    %c0_i32_0 = arith.constant 0 : i32
    %c0_i32_1 = arith.constant 0 : i32
    return %c0_i32, %c0_i32_0 : i32, i32
  }
  func.func @transform_6(%arg0: i32) -> (i32, i32) {
    %c0_i32 = arith.constant 0 : i32
    %c0_i32_0 = arith.constant 0 : i32
    %c0_i32_1 = arith.constant 0 : i32
    return %c0_i32, %c0_i32_0 : i32, i32
  }
  func.func @transform_7(%arg0: i32) -> (i32, i32) {
    %c0_i32 = arith.constant 0 : i32
    %c0_i32_0 = arith.constant 0 : i32
    return %arg0, %c0_i32 : i32, i32
  }
}

</mosaic_0001>

<llo_original>
// kernel: temporal_attention_forward.1
$region0: #{temporal_attention_forward.1}
  #allocation0 [shape = 'u32[]', space=smem, size = 0x4, offset = 0x4, fixed_abs, tag = 'smem constant byte address 0x4 - core index']
  #allocation1 [shape = 'u32[72,128]{1,0:T(1,128)}', space=vmem, size = 0x9000, scoped, tag = 'internal scratch']
  %s0 = inlined_call_operand.vmem [shape: f32[2,256], index: 0, kind: input, shape index: {}]
  %s1 = inlined_call_operand.hbm [shape: f32[256,256], index: 1, kind: input, shape index: {}]
  %s2 = inlined_call_operand.vmem [shape: f32[1,256], index: 2, kind: input, shape index: {}]
  %s3 = inlined_call_operand.hbm [shape: f32[256,256], index: 3, kind: input, shape index: {}]
  %s4 = inlined_call_operand.vmem [shape: f32[1,256], index: 4, kind: input, shape index: {}]
  %s5 = inlined_call_operand.hbm [shape: f32[256,128], index: 5, kind: input, shape index: {}]
  %s6 = inlined_call_operand.vmem [shape: f32[1,128], index: 6, kind: input, shape index: {}]
  %s7 = inlined_call_operand.hbm [shape: f32[2,128], index: 7, kind: output, shape index: {}]
  %s8 = sld [smem:[#allocation0]]
  $region50: #{temporal_attention_forward.1} parent=0
    _
  %s10 = ssub.s32 1, %s8
  %s11 = scalar_select 0, %s10, %s8
  $region1: #{temporal_attention_forward.1} parent=0
    #allocation2 [shape = 'u8[262144]{0}', space=vmem, size = 0x40000, scoped, tag = 'input window, operand 1, single buffered']
    #allocation3 [shape = 's32[1]{0}', space=sflag, size = 0x4, scoped, tag = 'scoped memory for temporal_attention_forward.1']
    #allocation4 [shape = 's32[1]{0}', space=sflag, size = 0x4, scoped, tag = 'scoped memory for temporal_attention_forward.1']
    #allocation5 [shape = 'u8[262144]{0}', space=vmem, size = 0x40000, scoped, tag = 'input window, operand 3, single buffered']
    #allocation6 [shape = 's32[1]{0}', space=sflag, size = 0x4, scoped, tag = 'scoped memory for temporal_attention_forward.1']
    #allocation7 [shape = 'u8[131072]{0}', space=vmem, size = 0x20000, scoped, tag = 'input window, operand 5, single buffered']
    #allocation8 [shape = 'u8[4096]{0}', space=vmem, size = 0x1000, scoped, tag = 'output window, operand 0, single buffered']
    %12 = vsyncpa [#allocation3], 0
    %13 = vsyncpa [#allocation6], 0
    %14 = vsyncpa [#allocation4], 0
    // Predicated region
    $region2: #{temporal_attention_forward.1} parent=1 // pred_check
      _
    $region3: #{temporal_attention_forward.1} parent=1 // pred_check_branch
      %16 = sbr.rel (0) target = $region5
    $region4: #{temporal_attention_forward.1} parent=1 // pred_region
      _
    $region5: #{temporal_attention_forward.1} parent=1 // pred_fallthru
      _
    // Predicated region
    $region6: #{temporal_attention_forward.1} parent=1 // pred_check
      _
    $region7: #{temporal_attention_forward.1} parent=1 // pred_check_branch
      %18 = sbr.rel (0) target = $region9
    $region8: #{temporal_attention_forward.1} parent=1 // pred_region
      %20 = vsyncadd [#allocation3], 0
      %s21 = sshll.u32 %s1, 4
      %s22 = int_to_ptr.hbm [resolvable:$true] %s21
      %s23 = sshll.u32 [#allocation2], 4
      %s24 = int_to_ptr.vmem [resolvable:$true] %s23
      %29 = dma.hbm_to_vmem [thread:$0]  %s22, 8192, %s24, [#allocation3], 256, 256, 16
    $region9: #{temporal_attention_forward.1} parent=1 // pred_fallthru
      _
    // Predicated region
    $region10: #{temporal_attention_forward.1} parent=1 // pred_check
      _
    $region11: #{temporal_attention_forward.1} parent=1 // pred_check_branch
      %31 = sbr.rel (0) target = $region13
    $region12: #{temporal_attention_forward.1} parent=1 // pred_region
      _
    $region13: #{temporal_attention_forward.1} parent=1 // pred_fallthru
      _
    // Predicated region
    $region14: #{temporal_attention_forward.1} parent=1 // pred_check
      _
    $region15: #{temporal_attention_forward.1} parent=1 // pred_check_branch
      %33 = sbr.rel (0) target = $region17
    $region16: #{temporal_attention_forward.1} parent=1 // pred_region
      %35 = vsyncadd [#allocation6], 0
      %s36 = sshll.u32 %s3, 4
      %s37 = int_to_ptr.hbm [resolvable:$true] %s36
      %s38 = sshll.u32 [#allocation5], 4
      %s39 = int_to_ptr.vmem [resolvable:$true] %s38
      %44 = dma.hbm_to_vmem [thread:$0]  %s37, 8192, %s39, [#allocation6], 256, 256, 16
    $region17: #{temporal_attention_forward.1} parent=1 // pred_fallthru
      _
    // Predicated region
    $region18: #{temporal_attention_forward.1} parent=1 // pred_check
      _
    $region19: #{temporal_attention_forward.1} parent=1 // pred_check_branch
      %46 = sbr.rel (0) target = $region21
    $region20: #{temporal_attention_forward.1} parent=1 // pred_region
      _
    $region21: #{temporal_attention_forward.1} parent=1 // pred_fallthru
      _
    // Predicated region
    $region22: #{temporal_attention_forward.1} parent=1 // pred_check
      _
    $region23: #{temporal_attention_forward.1} parent=1 // pred_check_branch
      %48 = sbr.rel (0) target = $region25
    $region24: #{temporal_attention_forward.1} parent=1 // pred_region
      %50 = vsyncadd [#allocation6], 0
      %s51 = sshll.u32 %s5, 4
      %s52 = int_to_ptr.hbm [resolvable:$true] %s51
      %s53 = sshll.u32 [#allocation7], 4
      %s54 = int_to_ptr.vmem [resolvable:$true] %s53
      %59 = dma.hbm_to_vmem [thread:$0]  %s52, 4096, %s54, [#allocation6], 128, 128, 8
    $region25: #{temporal_attention_forward.1} parent=1 // pred_fallthru
      _
    // Predicated region
    $region26: #{temporal_attention_forward.1} parent=1 // pred_check
      _
    $region27: #{temporal_attention_forward.1} parent=1 // pred_check_branch
      %61 = sbr.rel (0) target = $region29
    $region28: #{temporal_attention_forward.1} parent=1 // pred_region
      _
    $region29: #{temporal_attention_forward.1} parent=1 // pred_fallthru
      _
    // Predicated region
    $region30: #{temporal_attention_forward.1} parent=1 // pred_check
      _
    $region31: #{temporal_attention_forward.1} parent=1 // pred_check_branch
      %63 = sbr.rel (0) target = $region33
    $region32: #{temporal_attention_forward.1} parent=1 // pred_region
      %65 = dma.done [#allocation3], 8192
    $region33: #{temporal_attention_forward.1} parent=1 // pred_fallthru
      _
    // Predicated region
    $region34: #{temporal_attention_forward.1} parent=1 // pred_check
      _
    $region35: #{temporal_attention_forward.1} parent=1 // pred_check_branch
      %67 = sbr.rel (0) target = $region37
    $region36: #{temporal_attention_forward.1} parent=1 // pred_region
      %69 = dma.done [#allocation6], 8192
    $region37: #{temporal_attention_forward.1} parent=1 // pred_fallthru
      _
    // Predicated region
    $region38: #{temporal_attention_forward.1} parent=1 // pred_check
      _
    $region39: #{temporal_attention_forward.1} parent=1 // pred_check_branch
      %71 = sbr.rel (0) target = $region41
    $region40: #{temporal_attention_forward.1} parent=1 // pred_region
      %73 = dma.done [#allocation6], 4096
    $region41: #{temporal_attention_forward.1} parent=1 // pred_fallthru
      _
    %v74 = vld [vmem:[%s0] sm:$0xf]
    %v75 = vld [vmem:[%s0 + $0x4] sm:$0xf]
    %v76 = vld [vmem:[%s0 + $0x8] sm:$0xf]
    %v77 = vld [vmem:[%s0 + $0xc] sm:$0xf]
    %v78 = vld [vmem:[#allocation2] sm:$0xff]
    %v79 = vld [vmem:[#allocation2 + $0x8] sm:$0xff]
    %v80 = vld [vmem:[#allocation2 + $0x10] sm:$0xff]
    %v81 = vld [vmem:[#allocation2 + $0x18] sm:$0xff]
    %v82 = vld [vmem:[#allocation2 + $0x20] sm:$0xff]
    %v83 = vld [vmem:[#allocation2 + $0x28] sm:$0xff]
    %v84 = vld [vmem:[#allocation2 + $0x30] sm:$0xff]
    %v85 = vld [vmem:[#allocation2 + $0x38] sm:$0xff]
    %v86 = vld [vmem:[#allocation2 + $0x40] sm:$0xff]
    %v87 = vld [vmem:[#allocation2 + $0x48] sm:$0xff]
    %v88 = vld [vmem:[#allocation2 + $0x50] sm:$0xff]
    %v89 = vld [vmem:[#allocation2 + $0x58] sm:$0xff]
    %v90 = vld [vmem:[#allocation2 + $0x60] sm:$0xff]
    %v91 = vld [vmem:[#allocation2 + $0x68] sm:$0xff]
    %v92 = vld [vmem:[#allocation2 + $0x70] sm:$0xff]
    %v93 = vld [vmem:[#allocation2 + $0x78] sm:$0xff]
    %v94 = vld [vmem:[#allocation2 + $0x80] sm:$0xff]
    %v95 = vld [vmem:[#allocation2 + $0x88] sm:$0xff]
    %v96 = vld [vmem:[#allocation2 + $0x90] sm:$0xff]
    %v97 = vld [vmem:[#allocation2 + $0x98] sm:$0xff]
    %v98 = vld [vmem:[#allocation2 + $0xa0] sm:$0xff]
    %v99 = vld [vmem:[#allocation2 + $0xa8] sm:$0xff]
    %v100 = vld [vmem:[#allocation2 + $0xb0] sm:$0xff]
    %v101 = vld [vmem:[#allocation2 + $0xb8] sm:$0xff]
    %v102 = vld [vmem:[#allocation2 + $0xc0] sm:$0xff]
    %v103 = vld [vmem:[#allocation2 + $0xc8] sm:$0xff]
    %v104 = vld [vmem:[#allocation2 + $0xd0] sm:$0xff]
    %v105 = vld [vmem:[#allocation2 + $0xd8] sm:$0xff]
    %v106 = vld [vmem:[#allocation2 + $0xe0] sm:$0xff]
    %v107 = vld [vmem:[#allocation2 + $0xe8] sm:$0xff]
    %v108 = vld [vmem:[#allocation2 + $0xf0] sm:$0xff]
    %v109 = vld [vmem:[#allocation2 + $0xf8] sm:$0xff]
    %v110 = vld [vmem:[#allocation2 + $0x100] sm:$0xff]
    %v111 = vld [vmem:[#allocation2 + $0x108] sm:$0xff]
    %v112 = vld [vmem:[#allocation2 + $0x110] sm:$0xff]
    %v113 = vld [vmem:[#allocation2 + $0x118] sm:$0xff]
    %v114 = vld [vmem:[#allocation2 + $0x120] sm:$0xff]
    %v115 = vld [vmem:[#allocation2 + $0x128] sm:$0xff]
    %v116 = vld [vmem:[#allocation2 + $0x130] sm:$0xff]
    %v117 = vld [vmem:[#allocation2 + $0x138] sm:$0xff]
    %v118 = vld [vmem:[#allocation2 + $0x140] sm:$0xff]
    %v119 = vld [vmem:[#allocation2 + $0x148] sm:$0xff]
    %v120 = vld [vmem:[#allocation2 + $0x150] sm:$0xff]
    %v121 = vld [vmem:[#allocation2 + $0x158] sm:$0xff]
    %v122 = vld [vmem:[#allocation2 + $0x160] sm:$0xff]
    %v123 = vld [vmem:[#allocation2 + $0x168] sm:$0xff]
    %v124 = vld [vmem:[#allocation2 + $0x170] sm:$0xff]
    %v125 = vld [vmem:[#allocation2 + $0x178] sm:$0xff]
    %v126 = vld [vmem:[#allocation2 + $0x180] sm:$0xff]
    %v127 = vld [vmem:[#allocation2 + $0x188] sm:$0xff]
    %v128 = vld [vmem:[#allocation2 + $0x190] sm:$0xff]
    %v129 = vld [vmem:[#allocation2 + $0x198] sm:$0xff]
    %v130 = vld [vmem:[#allocation2 + $0x1a0] sm:$0xff]
    %v131 = vld [vmem:[#allocation2 + $0x1a8] sm:$0xff]
    %v132 = vld [vmem:[#allocation2 + $0x1b0] sm:$0xff]
    %v133 = vld [vmem:[#allocation2 + $0x1b8] sm:$0xff]
    %v134 = vld [vmem:[#allocation2 + $0x1c0] sm:$0xff]
    %v135 = vld [vmem:[#allocation2 + $0x1c8] sm:$0xff]
    %v136 = vld [vmem:[#allocation2 + $0x1d0] sm:$0xff]
    %v137 = vld [vmem:[#allocation2 + $0x1d8] sm:$0xff]
    %v138 = vld [vmem:[#allocation2 + $0x1e0] sm:$0xff]
    %v139 = vld [vmem:[#allocation2 + $0x1e8] sm:$0xff]
    %v140 = vld [vmem:[#allocation2 + $0x1f0] sm:$0xff]
    %v141 = vld [vmem:[#allocation2 + $0x1f8] sm:$0xff]
    %v142 = vld [vmem:[%s2] sm:$0x3]
    %v144 = vperm.slane %v142, 0
    %v145 = vperm.slane %v142, 1
    %152 = vst [vmem:[#allocation1] ss:$4 sm:$0xff] %v74
    %s153 = scalar_lea.vmem [#allocation1], 1
    %154 = vst [vmem:[%s153] ss:$4 sm:$0xff] %v75
    %s155 = scalar_lea.vmem [#allocation1], 2
    %156 = vst [vmem:[%s155] ss:$4 sm:$0xff] %v76
    %s157 = scalar_lea.vmem [#allocation1], 3
    %158 = vst [vmem:[%s157] ss:$4 sm:$0xff] %v77
    %v159 = vld.sshfl [vmem:[#allocation1] sm:$0xff pattern:$0x73625140]
    %v160 = vld.sshfl [vmem:[#allocation1 + $0x8] sm:$0xff pattern:$0x73625140]
    %163 = vmatpush.msra.mxu0 %v108
    %164 = vmatpush.msra.mxu0 %v106
    %165 = vmatpush.msra.mxu0 %v104
    %166 = vmatpush.msra.mxu0 %v102
    %167 = vmatpush.msra.mxu0 %v100
    %168 = vmatpush.msra.mxu0 %v98
    %169 = vmatpush.msra.mxu0 %v96
    %170 = vmatpush.msra.mxu0 %v94
    %171 = vmatpush.msra.mxu0 %v92
    %172 = vmatpush.msra.mxu0 %v90
    %173 = vmatpush.msra.mxu0 %v88
    %174 = vmatpush.msra.mxu0 %v86
    %175 = vmatpush.msra.mxu0 %v84
    %176 = vmatpush.msra.mxu0 %v82
    %177 = vmatpush.msra.mxu0 %v80
    %178 = vmatpush.msra.mxu0 %v78
    %179 = vmatmul.f32.gmra.mxu0 %v159
    %v180 = vpop.f32.mrf.mxu0
    %v181 = vadd.f32 %v144, %v180
    %182 = vdwg.mxu0
    %183 = vmatpush.msra.mxu0 %v140
    %184 = vmatpush.msra.mxu0 %v138
    %185 = vmatpush.msra.mxu0 %v136
    %186 = vmatpush.msra.mxu0 %v134
    %187 = vmatpush.msra.mxu0 %v132
    %188 = vmatpush.msra.mxu0 %v130
    %189 = vmatpush.msra.mxu0 %v128
    %190 = vmatpush.msra.mxu0 %v126
    %191 = vmatpush.msra.mxu0 %v124
    %192 = vmatpush.msra.mxu0 %v122
    %193 = vmatpush.msra.mxu0 %v120
    %194 = vmatpush.msra.mxu0 %v118
    %195 = vmatpush.msra.mxu0 %v116
    %196 = vmatpush.msra.mxu0 %v114
    %197 = vmatpush.msra.mxu0 %v112
    %198 = vmatpush.msra.mxu0 %v110
    %199 = vmatmul.f32.gmra.mxu0 %v160
    %v200 = vpop.f32.mrf.mxu0
    %v201 = vadd.f32 %v181, %v200
    %202 = vdwg.mxu0
    %203 = vmatpush.msra.mxu0 %v109
    %204 = vmatpush.msra.mxu0 %v107
    %205 = vmatpush.msra.mxu0 %v105
    %206 = vmatpush.msra.mxu0 %v103
    %207 = vmatpush.msra.mxu0 %v101
    %208 = vmatpush.msra.mxu0 %v99
    %209 = vmatpush.msra.mxu0 %v97
    %210 = vmatpush.msra.mxu0 %v95
    %211 = vmatpush.msra.mxu0 %v93
    %212 = vmatpush.msra.mxu0 %v91
    %213 = vmatpush.msra.mxu0 %v89
    %214 = vmatpush.msra.mxu0 %v87
    %215 = vmatpush.msra.mxu0 %v85
    %216 = vmatpush.msra.mxu0 %v83
    %217 = vmatpush.msra.mxu0 %v81
    %218 = vmatpush.msra.mxu0 %v79
    %219 = vmatmul.f32.gmra.mxu0 %v159
    %v220 = vpop.f32.mrf.mxu0
    %v221 = vadd.f32 %v145, %v220
    %222 = vdwg.mxu0
    %223 = vmatpush.msra.mxu0 %v141
    %224 = vmatpush.msra.mxu0 %v139
    %225 = vmatpush.msra.mxu0 %v137
    %226 = vmatpush.msra.mxu0 %v135
    %227 = vmatpush.msra.mxu0 %v133
    %228 = vmatpush.msra.mxu0 %v131
    %229 = vmatpush.msra.mxu0 %v129
    %230 = vmatpush.msra.mxu0 %v127
    %231 = vmatpush.msra.mxu0 %v125
    %232 = vmatpush.msra.mxu0 %v123
    %233 = vmatpush.msra.mxu0 %v121
    %234 = vmatpush.msra.mxu0 %v119
    %235 = vmatpush.msra.mxu0 %v117
    %236 = vmatpush.msra.mxu0 %v115
    %237 = vmatpush.msra.mxu0 %v113
    %238 = vmatpush.msra.mxu0 %v111
    %239 = vmatmul.f32.gmra.mxu0 %v160
    %v240 = vpop.f32.mrf.mxu0
    %v241 = vadd.f32 %v221, %v240
    %242 = vdwg.mxu0
    %v243 = vtanh.pop %v201
    %v244 = vtanh.pop %v241
    %v245 = vld [vmem:[#allocation5] sm:$0xff]
    %v246 = vld [vmem:[#allocation5 + $0x8] sm:$0xff]
    %v247 = vld [vmem:[#allocation5 + $0x10] sm:$0xff]
    %v248 = vld [vmem:[#allocation5 + $0x18] sm:$0xff]
    %v249 = vld [vmem:[#allocation5 + $0x20] sm:$0xff]
    %v250 = vld [vmem:[#allocation5 + $0x28] sm:$0xff]
    %v251 = vld [vmem:[#allocation5 + $0x30] sm:$0xff]
    %v252 = vld [vmem:[#allocation5 + $0x38] sm:$0xff]
    %v253 = vld [vmem:[#allocation5 + $0x40] sm:$0xff]
    %v254 = vld [vmem:[#allocation5 + $0x48] sm:$0xff]
    %v255 = vld [vmem:[#allocation5 + $0x50] sm:$0xff]
    %v256 = vld [vmem:[#allocation5 + $0x58] sm:$0xff]
    %v257 = vld [vmem:[#allocation5 + $0x60] sm:$0xff]
    %v258 = vld [vmem:[#allocation5 + $0x68] sm:$0xff]
    %v259 = vld [vmem:[#allocation5 + $0x70] sm:$0xff]
    %v260 = vld [vmem:[#allocation5 + $0x78] sm:$0xff]
    %v261 = vld [vmem:[#allocation5 + $0x80] sm:$0xff]
    %v262 = vld [vmem:[#allocation5 + $0x88] sm:$0xff]
    %v263 = vld [vmem:[#allocation5 + $0x90] sm:$0xff]
    %v264 = vld [vmem:[#allocation5 + $0x98] sm:$0xff]
    %v265 = vld [vmem:[#allocation5 + $0xa0] sm:$0xff]
    %v266 = vld [vmem:[#allocation5 + $0xa8] sm:$0xff]
    %v267 = vld [vmem:[#allocation5 + $0xb0] sm:$0xff]
    %v268 = vld [vmem:[#allocation5 + $0xb8] sm:$0xff]
    %v269 = vld [vmem:[#allocation5 + $0xc0] sm:$0xff]
    %v270 = vld [vmem:[#allocation5 + $0xc8] sm:$0xff]
    %v271 = vld [vmem:[#allocation5 + $0xd0] sm:$0xff]
    %v272 = vld [vmem:[#allocation5 + $0xd8] sm:$0xff]
    %v273 = vld [vmem:[#allocation5 + $0xe0] sm:$0xff]
    %v274 = vld [vmem:[#allocation5 + $0xe8] sm:$0xff]
    %v275 = vld [vmem:[#allocation5 + $0xf0] sm:$0xff]
    %v276 = vld [vmem:[#allocation5 + $0xf8] sm:$0xff]
    %v277 = vld [vmem:[#allocation5 + $0x100] sm:$0xff]
    %v278 = vld [vmem:[#allocation5 + $0x108] sm:$0xff]
    %v279 = vld [vmem:[#allocation5 + $0x110] sm:$0xff]
    %v280 = vld [vmem:[#allocation5 + $0x118] sm:$0xff]
    %v281 = vld [vmem:[#allocation5 + $0x120] sm:$0xff]
    %v282 = vld [vmem:[#allocation5 + $0x128] sm:$0xff]
    %v283 = vld [vmem:[#allocation5 + $0x130] sm:$0xff]
    %v284 = vld [vmem:[#allocation5 + $0x138] sm:$0xff]
    %v285 = vld [vmem:[#allocation5 + $0x140] sm:$0xff]
    %v286 = vld [vmem:[#allocation5 + $0x148] sm:$0xff]
    %v287 = vld [vmem:[#allocation5 + $0x150] sm:$0xff]
    %v288 = vld [vmem:[#allocation5 + $0x158] sm:$0xff]
    %v289 = vld [vmem:[#allocation5 + $0x160] sm:$0xff]
    %v290 = vld [vmem:[#allocation5 + $0x168] sm:$0xff]
    %v291 = vld [vmem:[#allocation5 + $0x170] sm:$0xff]
    %v292 = vld [vmem:[#allocation5 + $0x178] sm:$0xff]
    %v293 = vld [vmem:[#allocation5 + $0x180] sm:$0xff]
    %v294 = vld [vmem:[#allocation5 + $0x188] sm:$0xff]
    %v295 = vld [vmem:[#allocation5 + $0x190] sm:$0xff]
    %v296 = vld [vmem:[#allocation5 + $0x198] sm:$0xff]
    %v297 = vld [vmem:[#allocation5 + $0x1a0] sm:$0xff]
    %v298 = vld [vmem:[#allocation5 + $0x1a8] sm:$0xff]
    %v299 = vld [vmem:[#allocation5 + $0x1b0] sm:$0xff]
    %v300 = vld [vmem:[#allocation5 + $0x1b8] sm:$0xff]
    %v301 = vld [vmem:[#allocation5 + $0x1c0] sm:$0xff]
    %v302 = vld [vmem:[#allocation5 + $0x1c8] sm:$0xff]
    %v303 = vld [vmem:[#allocation5 + $0x1d0] sm:$0xff]
    %v304 = vld [vmem:[#allocation5 + $0x1d8] sm:$0xff]
    %v305 = vld [vmem:[#allocation5 + $0x1e0] sm:$0xff]
    %v306 = vld [vmem:[#allocation5 + $0x1e8] sm:$0xff]
    %v307 = vld [vmem:[#allocation5 + $0x1f0] sm:$0xff]
    %v308 = vld [vmem:[#allocation5 + $0x1f8] sm:$0xff]
    %v309 = vld [vmem:[%s4] sm:$0x3]
    %v311 = vperm.slane %v309, 0
    %v312 = vperm.slane %v309, 1
    %315 = vmatpush.msra.mxu0 %v275
    %316 = vmatpush.msra.mxu0 %v273
    %317 = vmatpush.msra.mxu0 %v271
    %318 = vmatpush.msra.mxu0 %v269
    %319 = vmatpush.msra.mxu0 %v267
    %320 = vmatpush.msra.mxu0 %v265
    %321 = vmatpush.msra.mxu0 %v263
    %322 = vmatpush.msra.mxu0 %v261
    %323 = vmatpush.msra.mxu0 %v259
    %324 = vmatpush.msra.mxu0 %v257
    %325 = vmatpush.msra.mxu0 %v255
    %326 = vmatpush.msra.mxu0 %v253
    %327 = vmatpush.msra.mxu0 %v251
    %328 = vmatpush.msra.mxu0 %v249
    %329 = vmatpush.msra.mxu0 %v247
    %330 = vmatpush.msra.mxu0 %v245
    %331 = vmatmul.f32.gmra.mxu0 %v243
    %v332 = vpop.f32.mrf.mxu0
    %v333 = vadd.f32 %v311, %v332
    %334 = vdwg.mxu0
    %335 = vmatpush.msra.mxu0 %v307
    %336 = vmatpush.msra.mxu0 %v305
    %337 = vmatpush.msra.mxu0 %v303
    %338 = vmatpush.msra.mxu0 %v301
    %339 = vmatpush.msra.mxu0 %v299
    %340 = vmatpush.msra.mxu0 %v297
    %341 = vmatpush.msra.mxu0 %v295
    %342 = vmatpush.msra.mxu0 %v293
    %343 = vmatpush.msra.mxu0 %v291
    %344 = vmatpush.msra.mxu0 %v289
    %345 = vmatpush.msra.mxu0 %v287
    %346 = vmatpush.msra.mxu0 %v285
    %347 = vmatpush.msra.mxu0 %v283
    %348 = vmatpush.msra.mxu0 %v281
    %349 = vmatpush.msra.mxu0 %v279
    %350 = vmatpush.msra.mxu0 %v277
    %351 = vmatmul.f32.gmra.mxu0 %v244
    %v352 = vpop.f32.mrf.mxu0
    %v353 = vadd.f32 %v333, %v352
    %354 = vdwg.mxu0
    %355 = vmatpush.msra.mxu0 %v276
    %356 = vmatpush.msra.mxu0 %v274
    %357 = vmatpush.msra.mxu0 %v272
    %358 = vmatpush.msra.mxu0 %v270
    %359 = vmatpush.msra.mxu0 %v268
    %360 = vmatpush.msra.mxu0 %v266
    %361 = vmatpush.msra.mxu0 %v264
    %362 = vmatpush.msra.mxu0 %v262
    %363 = vmatpush.msra.mxu0 %v260
    %364 = vmatpush.msra.mxu0 %v258
    %365 = vmatpush.msra.mxu0 %v256
    %366 = vmatpush.msra.mxu0 %v254
    %367 = vmatpush.msra.mxu0 %v252
    %368 = vmatpush.msra.mxu0 %v250
    %369 = vmatpush.msra.mxu0 %v248
    %370 = vmatpush.msra.mxu0 %v246
    %371 = vmatmul.f32.gmra.mxu0 %v243
    %v372 = vpop.f32.mrf.mxu0
    %v373 = vadd.f32 %v312, %v372
    %374 = vdwg.mxu0
    %375 = vmatpush.msra.mxu0 %v308
    %376 = vmatpush.msra.mxu0 %v306
    %377 = vmatpush.msra.mxu0 %v304
    %378 = vmatpush.msra.mxu0 %v302
    %379 = vmatpush.msra.mxu0 %v300
    %380 = vmatpush.msra.mxu0 %v298
    %381 = vmatpush.msra.mxu0 %v296
    %382 = vmatpush.msra.mxu0 %v294
    %383 = vmatpush.msra.mxu0 %v292
    %384 = vmatpush.msra.mxu0 %v290
    %385 = vmatpush.msra.mxu0 %v288
    %386 = vmatpush.msra.mxu0 %v286
    %387 = vmatpush.msra.mxu0 %v284
    %388 = vmatpush.msra.mxu0 %v282
    %389 = vmatpush.msra.mxu0 %v280
    %390 = vmatpush.msra.mxu0 %v278
    %391 = vmatmul.f32.gmra.mxu0 %v244
    %v392 = vpop.f32.mrf.mxu0
    %v393 = vadd.f32 %v373, %v392
    %394 = vdwg.mxu0
    %v395 = vtanh.pop %v353
    %v396 = vtanh.pop %v393
    %v397 = vld [vmem:[#allocation7] sm:$0xff]
    %v398 = vld [vmem:[#allocation7 + $0x8] sm:$0xff]
    %v399 = vld [vmem:[#allocation7 + $0x10] sm:$0xff]
    %v400 = vld [vmem:[#allocation7 + $0x18] sm:$0xff]
    %v401 = vld [vmem:[#allocation7 + $0x20] sm:$0xff]
    %v402 = vld [vmem:[#allocation7 + $0x28] sm:$0xff]
    %v403 = vld [vmem:[#allocation7 + $0x30] sm:$0xff]
    %v404 = vld [vmem:[#allocation7 + $0x38] sm:$0xff]
    %v405 = vld [vmem:[#allocation7 + $0x40] sm:$0xff]
    %v406 = vld [vmem:[#allocation7 + $0x48] sm:$0xff]
    %v407 = vld [vmem:[#allocation7 + $0x50] sm:$0xff]
    %v408 = vld [vmem:[#allocation7 + $0x58] sm:$0xff]
    %v409 = vld [vmem:[#allocation7 + $0x60] sm:$0xff]
    %v410 = vld [vmem:[#allocation7 + $0x68] sm:$0xff]
    %v411 = vld [vmem:[#allocation7 + $0x70] sm:$0xff]
    %v412 = vld [vmem:[#allocation7 + $0x78] sm:$0xff]
    %v413 = vld [vmem:[#allocation7 + $0x80] sm:$0xff]
    %v414 = vld [vmem:[#allocation7 + $0x88] sm:$0xff]
    %v415 = vld [vmem:[#allocation7 + $0x90] sm:$0xff]
    %v416 = vld [vmem:[#allocation7 + $0x98] sm:$0xff]
    %v417 = vld [vmem:[#allocation7 + $0xa0] sm:$0xff]
    %v418 = vld [vmem:[#allocation7 + $0xa8] sm:$0xff]
    %v419 = vld [vmem:[#allocation7 + $0xb0] sm:$0xff]
    %v420 = vld [vmem:[#allocation7 + $0xb8] sm:$0xff]
    %v421 = vld [vmem:[#allocation7 + $0xc0] sm:$0xff]
    %v422 = vld [vmem:[#allocation7 + $0xc8] sm:$0xff]
    %v423 = vld [vmem:[#allocation7 + $0xd0] sm:$0xff]
    %v424 = vld [vmem:[#allocation7 + $0xd8] sm:$0xff]
    %v425 = vld [vmem:[#allocation7 + $0xe0] sm:$0xff]
    %v426 = vld [vmem:[#allocation7 + $0xe8] sm:$0xff]
    %v427 = vld [vmem:[#allocation7 + $0xf0] sm:$0xff]
    %v428 = vld [vmem:[#allocation7 + $0xf8] sm:$0xff]
    %v429 = vld [vmem:[%s6] sm:$0x1]
    %v431 = vperm.slane %v429, 0
    %433 = vmatpush.msra.mxu0 %v412
    %434 = vmatpush.msra.mxu0 %v411
    %435 = vmatpush.msra.mxu0 %v410
    %436 = vmatpush.msra.mxu0 %v409
    %437 = vmatpush.msra.mxu0 %v408
    %438 = vmatpush.msra.mxu0 %v407
    %439 = vmatpush.msra.mxu0 %v406
    %440 = vmatpush.msra.mxu0 %v405
    %441 = vmatpush.msra.mxu0 %v404
    %442 = vmatpush.msra.mxu0 %v403
    %443 = vmatpush.msra.mxu0 %v402
    %444 = vmatpush.msra.mxu0 %v401
    %445 = vmatpush.msra.mxu0 %v400
    %446 = vmatpush.msra.mxu0 %v399
    %447 = vmatpush.msra.mxu0 %v398
    %448 = vmatpush.msra.mxu0 %v397
    %449 = vmatmul.f32.gmra.mxu0 %v395
    %v450 = vpop.f32.mrf.mxu0
    %v451 = vadd.f32 %v431, %v450
    %452 = vdwg.mxu0
    %453 = vmatpush.msra.mxu0 %v428
    %454 = vmatpush.msra.mxu0 %v427
    %455 = vmatpush.msra.mxu0 %v426
    %456 = vmatpush.msra.mxu0 %v425
    %457 = vmatpush.msra.mxu0 %v424
    %458 = vmatpush.msra.mxu0 %v423
    %459 = vmatpush.msra.mxu0 %v422
    %460 = vmatpush.msra.mxu0 %v421
    %461 = vmatpush.msra.mxu0 %v420
    %462 = vmatpush.msra.mxu0 %v419
    %463 = vmatpush.msra.mxu0 %v418
    %464 = vmatpush.msra.mxu0 %v417
    %465 = vmatpush.msra.mxu0 %v416
    %466 = vmatpush.msra.mxu0 %v415
    %467 = vmatpush.msra.mxu0 %v414
    %468 = vmatpush.msra.mxu0 %v413
    %469 = vmatmul.f32.gmra.mxu0 %v396
    %v470 = vpop.f32.mrf.mxu0
    %v471 = vadd.f32 %v451, %v470
    %472 = vdwg.mxu0
    %v473 = vtanh.pop %v471
    %v474 = vlaneseq
    %v475 = vand.u32 %v474, 127
    %vm476 = vcmp.lt.s32.totalorder %v475, 8
    %v477 = vmul.f32 %v473, 1.442695
    %v478 = vpow.pop %v477
    %v479 = vsel %vm476, %v478, 0.0
    %480 = vadd.xlane.f32.xlu0 %v479
    %v481 = vpop.xlane.xlu0 %480
    %v482 = vrcp.pop %v481
    %v483 = vmul.f32 %v479, %v482
    %484 = vst [vmem:[#allocation8] sm:$0xff] %v483
    // Predicated region
    $region42: #{temporal_attention_forward.1} parent=1 // pred_check
      _
    $region43: #{temporal_attention_forward.1} parent=1 // pred_check_branch
      %486 = sbr.rel (0) target = $region45
    $region44: #{temporal_attention_forward.1} parent=1 // pred_region
      %488 = vsyncadd [#allocation4], 96
      %s489 = sshll.u32 [#allocation8], 4
      %s490 = int_to_ptr.vmem [resolvable:$true] %s489
      %s491 = sshll.u32 %s7, 4
      %s492 = int_to_ptr.hbm [resolvable:$true] %s491
      %497 = dma.vmem_to_hbm [thread:$0]  %s490, 32, %s492, [#allocation4], 32, 32, 2
    $region45: #{temporal_attention_forward.1} parent=1 // pred_fallthru
      _
    // Predicated region
    $region46: #{temporal_attention_forward.1} parent=1 // pred_check
      _
    $region47: #{temporal_attention_forward.1} parent=1 // pred_check_branch
      %499 = sbr.rel (0) target = $region49
    $region48: #{temporal_attention_forward.1} parent=1 // pred_region
      %501 = dma.done [#allocation4], 128
    $region49: #{temporal_attention_forward.1} parent=1 // pred_fallthru
      _
    %502 = vsyncpa [#allocation3], 1
    %503 = vsyncpa [#allocation6], 1
    %504 = vsyncpa [#allocation4], 1

</llo_original>
